<compile_context>
chip_gen: v7x
topology: tpu7x:2x2x1
jax: 0.10.0
libtpu: 0.0.40
codegen_flags: <defaults>
</compile_context>

<pallas_src>
import functools

import jax
import jax.numpy as jnp
import numpy as np
from jax import lax
from jax.experimental import pallas as pl
from jax.experimental.pallas import tpu as pltpu


def _tconv_ln_lrelu_kernel(x_ref, u_ref, w_ref, m_ref, mt_ref, ln_ref, o_ref,
                           xc_ref, *, K, C_in, dilation, L_out, Lp, NB, eps,
                           neg_slope):
    """One grid step = NB batch samples.

    x_ref  : (NB, C_in, L_in)        raw input samples (native dtype)
    u_ref  : (L_in, L_src)           upsample/shift selection matrix
    w_ref  : (C_out, K*C_in + 1)     flipped taps, conv bias folded as last col
    m_ref  : (NB*Lp, NB)             per-sample column-sum mask (pads excluded)
    mt_ref : (NB, NB*Lp)             per-sample broadcast mask (pads excluded)
    ln_ref : (2, C_out, NB*Lp)       LayerNorm weight / bias (lane padded, tiled)
    o_ref  : (C_out, NB*Lp)          lane-dense output slab
    xc_ref : (K*C_in + 1, NB*Lp)     im2col scratch (+ ones row for the bias)
    """
    C_out = o_ref.shape[0]
    KC = K * C_in
    NBL = NB * Lp

    # Folded-bias "ones" row.  Rewritten every step so the scratch carries no
    # cross-step state (safe when the grid axis is sharded across TensorCores).
    xc_ref[KC:KC + 1, :] = jnp.ones((1, NBL), dtype=xc_ref.dtype)

    # Fused upsample (stride zero-insert) + left pad + im2col.  The selection
    # matrix U places x[i] at column p_left + i*stride, so the zero-inserted,
    # padded row is materialised directly in VMEM -- never in HBM.
    u = u_ref[...]
    for n in range(NB):                                   # static, NB small
        up = jnp.dot(x_ref[n], u, preferred_element_type=jnp.float32)
        up = up.astype(xc_ref.dtype)                      # (C_in, L_src)
        for k in range(K):                                # static, K small
            # 128-aligned destination lane offset, full-Lp width (unmasked vst).
            xc_ref[k * C_in:(k + 1) * C_in, n * Lp:(n + 1) * Lp] = (
                up[:, k * dilation:k * dilation + Lp])

    # Single MXU contraction: all taps / channels / samples + folded bias.
    acc = jnp.dot(w_ref[...], xc_ref[...],
                  preferred_element_type=jnp.float32)     # (C_out, NBL) f32

    # Per-sample LayerNorm over (C_out, L_out) -- two-pass (mean-subtracted)
    # statistics; the masks are step-invariant inputs and exclude lane padding.
    inv_cnt = 1.0 / float(C_out * L_out)
    if NB == 1:
        # Degenerate single-sample block: plain masked reductions / broadcasts.
        valid = mt_ref[...]                                          # (1, NBL)
        s = jnp.sum(acc * valid, axis=1, keepdims=True)              # (C_out, 1)
        mean = jnp.sum(s, axis=0, keepdims=True) * inv_cnt           # (1, 1)
        cen = acc - mean * valid
        ss = jnp.sum(cen * cen * valid, axis=1, keepdims=True)
        var = jnp.sum(ss, axis=0, keepdims=True) * inv_cnt
        rstd_b = lax.rsqrt(var + eps) * valid                        # (1, NBL)
    else:
        # Segment statistics on the MXU (masks DMA'd once, kept resident).
        s = jnp.dot(acc, m_ref[...], preferred_element_type=jnp.float32)
        mean = jnp.sum(s, axis=0, keepdims=True) * inv_cnt           # (1, NB)
        cen = acc - jnp.dot(mean, mt_ref[...],
                            preferred_element_type=jnp.float32)
        ss = jnp.dot(cen * cen, m_ref[...], preferred_element_type=jnp.float32)
        var = jnp.sum(ss, axis=0, keepdims=True) * inv_cnt           # (1, NB)
        rstd_b = jnp.dot(lax.rsqrt(var + eps), mt_ref[...],
                         preferred_element_type=jnp.float32)         # (1, NBL)

    y = cen * rstd_b
    y = y * ln_ref[0] + ln_ref[1]                         # LN affine
    y = jnp.where(y >= 0, y, neg_slope * y)               # LeakyReLU(0.02)
    o_ref[...] = y.astype(o_ref.dtype)


def layer_normalized_lrelu_tconv1d(x, w, b, ln_w, ln_b, *, stride=1, padding=0,
                                   dilation=1, out_padding=0, eps=1e-5,
                                   neg_slope=0.02):
    """x: (N, C_in, L_in); w: (C_in, C_out, K) (PyTorch ConvTranspose1d layout)."""
    N, C_in, L_in = x.shape
    _, C_out, K = w.shape
    L_out = (L_in - 1) * stride - 2 * padding + dilation * (K - 1) + out_padding + 1
    p_left = dilation * (K - 1) - padding
    # TODO(synk): padding > dilation*(K-1) would need output cropping (unsupported).
    assert p_left >= 0, "padding must be <= dilation * (kernel_size - 1)"

    Lp = ((L_out + 127) // 128) * 128          # per-sample lane padding (vst-aligned)
    L_src = Lp + (K - 1) * dilation            # width of the on-chip upsampled rows
    KC1 = K * C_in + 1
    isz = jnp.dtype(x.dtype).itemsize

    # ---- samples per grid step (NB): small, VMEM-aware, >= 2 grid steps ------
    NB = max(1, min(N, 16, 2048 // Lp))
    if N > 1 and -(-N // NB) < 2:              # v7x: keep both TensorCores busy
        NB = -(-N // 2)

    def _vmem_bytes(nb):
        nbl = nb * Lp
        return (2 * nb * C_in * L_in * isz         # input block (double-buffered)
                + 2 * C_out * nbl * isz            # output block (double-buffered)
                + KC1 * nbl * isz                  # im2col scratch
                + L_in * L_src * isz               # upsample matrix
                + C_out * KC1 * isz                # weights
                + 2 * nb * nbl * 4                 # segment masks M, Mt
                + 2 * C_out * nbl * 4              # LayerNorm params
                + 8 * C_out * nbl * 4)             # live f32 temporaries

    while NB > 1 and _vmem_bytes(NB) > (40 << 20):
        NB = max(1, NB // 2)

    steps = -(-N // NB)
    N_pad = steps * NB
    NBL = NB * Lp

    # ---- operands (step-invariant ones use constant index_maps: DMA'd once) --
    x_pad = jnp.pad(x, ((0, N_pad - N), (0, 0), (0, 0)))   # native dtype, raw length

    u_np = np.zeros((L_in, L_src), np.float32)
    u_np[np.arange(L_in), p_left + np.arange(L_in) * stride] = 1.0
    U = jnp.asarray(u_np).astype(x.dtype)

    # NOTE: in a real model the weight prep below happens once at load time.
    w_f = w[:, :, ::-1]                                     # (C_in, C_out, K)
    Wp = jnp.transpose(w_f, (1, 2, 0)).reshape(C_out, K * C_in)
    Wb = jnp.concatenate([Wp, b.reshape(C_out, 1)], axis=1).astype(x.dtype)

    col = np.arange(NBL)
    owner = col // Lp
    valid = (col % Lp) < L_out
    m_np = ((owner[:, None] == np.arange(NB)[None, :])
            & valid[:, None]).astype(np.float32)            # (NBL, NB)
    mt_np = ((owner[None, :] == np.arange(NB)[:, None])
             & valid[None, :]).astype(np.float32)           # (NB, NBL)
    M = jnp.asarray(m_np)
    Mt = jnp.asarray(mt_np)

    lnw_p = jnp.pad(ln_w.astype(jnp.float32), ((0, 0), (0, Lp - L_out)))
    lnb_p = jnp.pad(ln_b.astype(jnp.float32), ((0, 0), (0, Lp - L_out)))
    ln_packed = jnp.stack([jnp.tile(lnw_p, (1, NB)),
                           jnp.tile(lnb_p, (1, NB))], axis=0)  # (2, C_out, NBL)

    kernel = functools.partial(_tconv_ln_lrelu_kernel, K=K, C_in=C_in,
                               dilation=dilation, L_out=L_out, Lp=Lp, NB=NB,
                               eps=eps, neg_slope=neg_slope)

    flops_step = (2 * NB * C_in * L_in * L_src             # on-chip upsample
                  + 2 * C_out * KC1 * NBL                  # main contraction
                  + 2 * 2 * C_out * NBL * NB               # stats matmuls
                  + 2 * 2 * NB * NBL)                      # stat broadcasts
    cost = pl.CostEstimate(
        flops=int(steps * flops_step),
        transcendentals=int(steps * NB),
        bytes_accessed=int(isz * (N_pad * C_in * L_in + C_out * N_pad * Lp
                                  + L_in * L_src + C_out * KC1)
                           + 4 * (2 * NB * NBL + 2 * C_out * NBL)))

    vmem_limit = int(min(max(2 * _vmem_bytes(NB), 32 << 20), 56 << 20))

    out2d = pl.pallas_call(
        kernel,
        out_shape=jax.ShapeDtypeStruct((C_out, N_pad * Lp), x.dtype),
        grid=(steps,),
        in_specs=[
            # TODO(synk): if the per-step input DMA becomes exposed, try
            # pipeline_mode=pl.Buffered(3) on this spec.
            pl.BlockSpec((NB, C_in, L_in), lambda i: (i, 0, 0)),
            pl.BlockSpec((L_in, L_src), lambda i: (0, 0)),
            pl.BlockSpec((C_out, KC1), lambda i: (0, 0)),
            pl.BlockSpec((NBL, NB), lambda i: (0, 0)),
            pl.BlockSpec((NB, NBL), lambda i: (0, 0)),
            pl.BlockSpec((2, C_out, NBL), lambda i: (0, 0, 0)),
        ],
        out_specs=pl.BlockSpec((C_out, NBL), lambda i: (0, i)),
        scratch_shapes=[pltpu.VMEM((KC1, NBL), x.dtype)],
        compiler_params=pltpu.CompilerParams(
            dimension_semantics=("parallel",),
            vmem_limit_bytes=vmem_limit),
        cost_estimate=cost,
    )(x_pad, U, Wb, M, Mt, ln_packed)

    # Layout plumbing only: (C_out, N_pad*Lp) -> (N, C_out, L_out).
    out = out2d.reshape(C_out, N_pad, Lp)[:, :N, :L_out]
    return jnp.transpose(out, (1, 0, 2))


def _reference(x, w, b, ln_w, ln_b, *, stride, padding, dilation, out_padding,
               eps=1e-5, neg_slope=0.02):
    """Independent pure-JAX reference (lax conv with lhs_dilation == ConvTranspose1d)."""
    K = w.shape[-1]
    p_left = dilation * (K - 1) - padding
    p_right = dilation * (K - 1) - padding + out_padding
    w_conv = jnp.transpose(w[:, :, ::-1], (1, 0, 2))        # (C_out, C_in, K)
    y = lax.conv_general_dilated(
        x, w_conv, window_strides=(1,), padding=[(p_left, p_right)],
        lhs_dilation=(stride,), rhs_dilation=(dilation,),
        dimension_numbers=("NCH", "OIH", "NCH"))
    y = y + b[None, :, None]
    mean = jnp.mean(y, axis=(1, 2), keepdims=True)
    var = jnp.mean((y - mean) ** 2, axis=(1, 2), keepdims=True)
    y = (y - mean) * lax.rsqrt(var + eps)
    y = y * ln_w[None] + ln_b[None]
    return jnp.where(y >= 0, y, neg_slope * y)


if __name__ == "__main__":
    # Module config (matches __init__ args): input_shape=(N, C_in, L_in)
    C_in, L_in, C_out, K = 4, 16, 8, 3
    stride, dilation, padding, out_padding = 2, 1, 1, 1
    L_out = (L_in - 1) * stride - 2 * padding + dilation * (K - 1) + out_padding + 1  # 32

    key = jax.random.PRNGKey(0)
    # N=2 exercises the NB=1 (reduction-stats) path with 2 grid steps;
    # N=8 exercises the NB>1 (mask-matmul stats) path.
    for N in (2, 8):
        key, kx, kw, kb, klw, klb = jax.random.split(key, 6)
        x = jax.random.normal(kx, (N, C_in, L_in), jnp.float32)
        conv_w = jax.random.normal(kw, (C_in, C_out, K), jnp.float32) * 0.2
        conv_b = jax.random.normal(kb, (C_out,), jnp.float32) * 0.1
        ln_w = 1.0 + 0.1 * jax.random.normal(klw, (C_out, L_out), jnp.float32)
        ln_b = 0.1 * jax.random.normal(klb, (C_out, L_out), jnp.float32)

        fwd = jax.jit(functools.partial(
            layer_normalized_lrelu_tconv1d, stride=stride, padding=padding,
            dilation=dilation, out_padding=out_padding))
        out = jax.block_until_ready(fwd(x, conv_w, conv_b, ln_w, ln_b))

        ref = _reference(x, conv_w, conv_b, ln_w, ln_b, stride=stride,
                         padding=padding, dilation=dilation,
                         out_padding=out_padding)
        np.testing.assert_allclose(np.asarray(out), np.asarray(ref),
                                   rtol=2e-4, atol=2e-4)
        assert out.shape == (N, C_out, L_out)
    print("KERNEL_OK")
</pallas_src>

<mosaic_0001>
module attributes {stable_mosaic.version = 11 : i64} {
  func.func @_tconv_ln_lrelu_kernel(%arg0: i32, %arg1: memref<1x4x16xf32, #tpu.memory_space<vmem>>, %arg2: memref<16x130xf32, #tpu.memory_space<vmem>>, %arg3: memref<8x13xf32, #tpu.memory_space<vmem>>, %arg4: memref<128x1xf32, #tpu.memory_space<vmem>>, %arg5: memref<1x128xf32, #tpu.memory_space<vmem>>, %arg6: memref<2x8x128xf32, #tpu.memory_space<vmem>>, %arg7: memref<8x128xf32, #tpu.memory_space<vmem>>, %arg8: memref<13x128xf32, #tpu.memory_space<vmem>>) attributes {dimension_semantics = [#tpu.dimension_semantics<parallel>], iteration_bounds = array<i64: 2>, scalar_prefetch = 0 : i64, scratch_operands = 1 : i64, tpu.core_type = #tpu.core_type<tc>, window_params = [{transform_indices = @transform_0, window_bounds = array<i64: 1, 4, 16>}, {pipeline_mode = #tpu.pipeline_mode<synchronous>, transform_indices = @transform_1, window_bounds = array<i64: 16, 130>}, {pipeline_mode = #tpu.pipeline_mode<synchronous>, transform_indices = @transform_2, window_bounds = array<i64: 8, 13>}, {pipeline_mode = #tpu.pipeline_mode<synchronous>, transform_indices = @transform_3, window_bounds = array<i64: 128, 1>}, {pipeline_mode = #tpu.pipeline_mode<synchronous>, transform_indices = @transform_4, window_bounds = array<i64: 1, 128>}, {pipeline_mode = #tpu.pipeline_mode<synchronous>, transform_indices = @transform_5, window_bounds = array<i64: 2, 8, 128>}, {transform_indices = @transform_6, window_bounds = array<i64: 8, 128>}]} {
    %cst = arith.constant 1.000000e+00 : f32
    %0 = vector.broadcast %cst : f32 to vector<1x128xf32>
    %c12 = arith.constant 12 : index
    %c0 = arith.constant 0 : index
    %1 = vector.load %arg8[%c12, %c0] : memref<13x128xf32, #tpu.memory_space<vmem>>, vector<1x128xf32>
    tpu.vector_store %arg8[%c12, %c0], %0 {strides = array<i32>} : memref<13x128xf32, #tpu.memory_space<vmem>>, vector<1x128xf32>,
    %c0_0 = arith.constant 0 : index
    %c0_1 = arith.constant 0 : index
    %2 = vector.load %arg2[%c0_0, %c0_1] : memref<16x130xf32, #tpu.memory_space<vmem>>, vector<16x130xf32>
    %c0_2 = arith.constant 0 : index
    %c0_3 = arith.constant 0 : index
    %c0_4 = arith.constant 0 : index
    %3 = vector.load %arg1[%c0_2, %c0_3, %c0_4] : memref<1x4x16xf32, #tpu.memory_space<vmem>>, vector<1x4x16xf32>
    %4 = vector.shape_cast %3 : vector<1x4x16xf32> to vector<4x16xf32>
    %cst_5 = arith.constant dense<0.000000e+00> : vector<4x130xf32>
    %5 = tpu.matmul %4, %2, %cst_5 {dimension_numbers = #tpu.dot_dimension_numbers<[1], [0], [0], [1], [0, 0, 1, 1], [], []>} : vector<4x16xf32>, vector<16x130xf32>, vector<4x130xf32> -> vector<4x130xf32>
    %6 = vector.extract_strided_slice %5 {offsets = [0, 0], sizes = [4, 128], strides = [1, 1]} : vector<4x130xf32> to vector<4x128xf32>
    %c0_6 = arith.constant 0 : index
    %c0_7 = arith.constant 0 : index
    %7 = vector.load %arg8[%c0_6, %c0_7] : memref<13x128xf32, #tpu.memory_space<vmem>>, vector<4x128xf32>
    tpu.vector_store %arg8[%c0_6, %c0_7], %6 {strides = array<i32>} : memref<13x128xf32, #tpu.memory_space<vmem>>, vector<4x128xf32>,
    %8 = vector.extract_strided_slice %5 {offsets = [0, 1], sizes = [4, 128], strides = [1, 1]} : vector<4x130xf32> to vector<4x128xf32>
    %c4 = arith.constant 4 : index
    %c0_8 = arith.constant 0 : index
    %9 = vector.load %arg8[%c4, %c0_8] : memref<13x128xf32, #tpu.memory_space<vmem>>, vector<4x128xf32>
    tpu.vector_store %arg8[%c4, %c0_8], %8 {strides = array<i32>} : memref<13x128xf32, #tpu.memory_space<vmem>>, vector<4x128xf32>,
    %10 = vector.extract_strided_slice %5 {offsets = [0, 2], sizes = [4, 128], strides = [1, 1]} : vector<4x130xf32> to vector<4x128xf32>
    %c8 = arith.constant 8 : index
    %c0_9 = arith.constant 0 : index
    %11 = vector.load %arg8[%c8, %c0_9] : memref<13x128xf32, #tpu.memory_space<vmem>>, vector<4x128xf32>
    tpu.vector_store %arg8[%c8, %c0_9], %10 {strides = array<i32>} : memref<13x128xf32, #tpu.memory_space<vmem>>, vector<4x128xf32>,
    %c0_10 = arith.constant 0 : index
    %c0_11 = arith.constant 0 : index
    %12 = vector.load %arg3[%c0_10, %c0_11] : memref<8x13xf32, #tpu.memory_space<vmem>>, vector<8x13xf32>
    %c0_12 = arith.constant 0 : index
    %c0_13 = arith.constant 0 : index
    %13 = vector.load %arg8[%c0_12, %c0_13] : memref<13x128xf32, #tpu.memory_space<vmem>>, vector<13x128xf32>
    %cst_14 = arith.constant dense<0.000000e+00> : vector<8x128xf32>
    %14 = tpu.matmul %12, %13, %cst_14 {dimension_numbers = #tpu.dot_dimension_numbers<[1], [0], [0], [1], [0, 0, 1, 1], [], []>} : vector<8x13xf32>, vector<13x128xf32>, vector<8x128xf32> -> vector<8x128xf32>
    %c0_15 = arith.constant 0 : index
    %c0_16 = arith.constant 0 : index
    %15 = vector.load %arg5[%c0_15, %c0_16] : memref<1x128xf32, #tpu.memory_space<vmem>>, vector<1x128xf32>
    %16 = vector.broadcast %15 : vector<1x128xf32> to vector<8x128xf32>
    %17 = arith.mulf %14, %16 : vector<8x128xf32>
    %cst_17 = arith.constant dense<0.000000e+00> : vector<8xf32>
    %18 = vector.multi_reduction <add>, %17, %cst_17 [1] : vector<8x128xf32> to vector<8xf32>
    %19 = vector.shape_cast %18 : vector<8xf32> to vector<8x1xf32>
    %cst_18 = arith.constant dense<0.000000e+00> : vector<1xf32>
    %20 = vector.multi_reduction <add>, %19, %cst_18 [0] : vector<8x1xf32> to vector<1xf32>
    %21 = vector.shape_cast %20 : vector<1xf32> to vector<1x1xf32>
    %cst_19 = arith.constant 3.906250e-03 : f32
    %22 = vector.broadcast %cst_19 : f32 to vector<1x1xf32>
    %23 = arith.mulf %21, %22 : vector<1x1xf32>
    %24 = vector.broadcast %23 : vector<1x1xf32> to vector<1x128xf32>
    %25 = arith.mulf %24, %15 : vector<1x128xf32>
    %26 = vector.broadcast %25 : vector<1x128xf32> to vector<8x128xf32>
    %27 = arith.subf %14, %26 : vector<8x128xf32>
    %28 = arith.mulf %27, %27 : vector<8x128xf32>
    %29 = vector.broadcast %15 : vector<1x128xf32> to vector<8x128xf32>
    %30 = arith.mulf %28, %29 : vector<8x128xf32>
    %cst_20 = arith.constant dense<0.000000e+00> : vector<8xf32>
    %31 = vector.multi_reduction <add>, %30, %cst_20 [1] : vector<8x128xf32> to vector<8xf32>
    %32 = vector.shape_cast %31 : vector<8xf32> to vector<8x1xf32>
    %cst_21 = arith.constant dense<0.000000e+00> : vector<1xf32>
    %33 = vector.multi_reduction <add>, %32, %cst_21 [0] : vector<8x1xf32> to vector<1xf32>
    %34 = vector.shape_cast %33 : vector<1xf32> to vector<1x1xf32>
    %cst_22 = arith.constant 3.906250e-03 : f32
    %35 = vector.broadcast %cst_22 : f32 to vector<1x1xf32>
    %36 = arith.mulf %34, %35 : vector<1x1xf32>
    %cst_23 = arith.constant 9.99999974E-6 : f32
    %37 = vector.broadcast %cst_23 : f32 to vector<1x1xf32>
    %38 = arith.addf %36, %37 : vector<1x1xf32>
    %39 = math.rsqrt %38 : vector<1x1xf32>
    %40 = vector.broadcast %39 : vector<1x1xf32> to vector<1x128xf32>
    %41 = arith.mulf %40, %15 : vector<1x128xf32>
    %42 = vector.broadcast %41 : vector<1x128xf32> to vector<8x128xf32>
    %43 = arith.mulf %27, %42 : vector<8x128xf32>
    %c0_24 = arith.constant 0 : index
    %c0_25 = arith.constant 0 : index
    %c0_26 = arith.constant 0 : index
    %44 = vector.load %arg6[%c0_24, %c0_25, %c0_26] : memref<2x8x128xf32, #tpu.memory_space<vmem>>, vector<1x8x128xf32>
    %45 = vector.shape_cast %44 : vector<1x8x128xf32> to vector<8x128xf32>
    %46 = arith.mulf %43, %45 : vector<8x128xf32>
    %c1 = arith.constant 1 : index
    %c0_27 = arith.constant 0 : index
    %c0_28 = arith.constant 0 : index
    %47 = vector.load %arg6[%c1, %c0_27, %c0_28] : memref<2x8x128xf32, #tpu.memory_space<vmem>>, vector<1x8x128xf32>
    %48 = vector.shape_cast %47 : vector<1x8x128xf32> to vector<8x128xf32>
    %49 = arith.addf %46, %48 : vector<8x128xf32>
    %cst_29 = arith.constant 0.000000e+00 : f32
    %50 = vector.broadcast %cst_29 : f32 to vector<8x128xf32>
    %51 = arith.cmpf oge, %49, %50 : vector<8x128xf32>
    %cst_30 = arith.constant 2.000000e-02 : f32
    %52 = vector.broadcast %cst_30 : f32 to vector<8x128xf32>
    %53 = arith.mulf %52, %49 : vector<8x128xf32>
    %54 = arith.select %51, %49, %53 : vector<8x128xi1>, vector<8x128xf32>
    %c0_31 = arith.constant 0 : index
    %c0_32 = arith.constant 0 : index
    %55 = vector.load %arg7[%c0_31, %c0_32] : memref<8x128xf32, #tpu.memory_space<vmem>>, vector<8x128xf32>
    tpu.vector_store %arg7[%c0_31, %c0_32], %54 {strides = array<i32>} : memref<8x128xf32, #tpu.memory_space<vmem>>, vector<8x128xf32>,
    return
  }
  func.func @transform_0(%arg0: i32) -> (i32, i32, i32) {
    %c0_i32 = arith.constant 0 : i32
    %c0_i32_0 = arith.constant 0 : i32
    %c0_i32_1 = arith.constant 0 : i32
    return %arg0, %c0_i32, %c0_i32_0 : i32, i32, i32
  }
  func.func @transform_1(%arg0: i32) -> (i32, i32) {
    %c0_i32 = arith.constant 0 : i32
    %c0_i32_0 = arith.constant 0 : i32
    %c0_i32_1 = arith.constant 0 : i32
    return %c0_i32, %c0_i32_0 : i32, i32
  }
  func.func @transform_2(%arg0: i32) -> (i32, i32) {
    %c0_i32 = arith.constant 0 : i32
    %c0_i32_0 = arith.constant 0 : i32
    %c0_i32_1 = arith.constant 0 : i32
    return %c0_i32, %c0_i32_0 : i32, i32
  }
  func.func @transform_3(%arg0: i32) -> (i32, i32) {
    %c0_i32 = arith.constant 0 : i32
    %c0_i32_0 = arith.constant 0 : i32
    %c0_i32_1 = arith.constant 0 : i32
    return %c0_i32, %c0_i32_0 : i32, i32
  }
  func.func @transform_4(%arg0: i32) -> (i32, i32) {
    %c0_i32 = arith.constant 0 : i32
    %c0_i32_0 = arith.constant 0 : i32
    %c0_i32_1 = arith.constant 0 : i32
    return %c0_i32, %c0_i32_0 : i32, i32
  }
  func.func @transform_5(%arg0: i32) -> (i32, i32, i32) {
    %c0_i32 = arith.constant 0 : i32
    %c0_i32_0 = arith.constant 0 : i32
    %c0_i32_1 = arith.constant 0 : i32
    %c0_i32_2 = arith.constant 0 : i32
    return %c0_i32, %c0_i32_0, %c0_i32_1 : i32, i32, i32
  }
  func.func @transform_6(%arg0: i32) -> (i32, i32) {
    %c0_i32 = arith.constant 0 : i32
    %c0_i32_0 = arith.constant 0 : i32
    return %c0_i32, %arg0 : i32, i32
  }
}

</mosaic_0001>

<llo_original>
// kernel: layer_normalized_lrelu_tconv1d.1
$region0: #{layer_normalized_lrelu_tconv1d.1}
  #allocation0 [shape = 'u32[]', space=smem, size = 0x4, offset = 0x4, fixed_abs, tag = 'smem constant byte address 0x4 - core index']
  #allocation1 [shape = 'u32[144,128]{1,0:T(1,128)}', space=vmem, size = 0x12000, scoped, tag = 'internal scratch']
  #allocation2 [shape = 'f32[13,128]{1,0:T(8,128)}', space=vmem, size = 0x2000, scoped, tag = 'scratch operand']
  %s0 = inlined_call_operand.vmem [shape: f32[2,4,16], index: 0, kind: input, shape index: {}]
  %s1 = inlined_call_operand.vmem [shape: f32[16,130], index: 1, kind: input, shape index: {}]
  %s2 = inlined_call_operand.vmem [shape: f32[8,13], index: 2, kind: input, shape index: {}]
  %s3 = inlined_call_operand.vmem [shape: f32[128,1], index: 3, kind: input, shape index: {}]
  %s4 = inlined_call_operand.vmem [shape: f32[1,128], index: 4, kind: input, shape index: {}]
  %s5 = inlined_call_operand.vmem [shape: f32[2,8,128], index: 5, kind: input, shape index: {}]
  %s6 = inlined_call_operand.vmem [shape: f32[8,256], index: 6, kind: output, shape index: {}]
  %s7 = sld [smem:[#allocation0]]
  $region57: #{layer_normalized_lrelu_tconv1d.1} parent=0
    _
  %s9 = ssub.s32 1, %s7
  %s10 = scalar_select 0, %s9, %s7
  loop: start=0, step=1, limit=4
  $region2: #{layer_normalized_lrelu_tconv1d.1} parent=0 // loop_pre_header
    _
  $region3: #{layer_normalized_lrelu_tconv1d.1} parent=0 // loop_header
    %s12 = sphi 0, %s16
    %p13 = scmp.ge.s32.totalorder %s12, 4
    %s22 = sphi 0, %s24
    %s25 = sphi 0, %s22
    %s26 = sphi 0, %s25
    %s42 = sphi 0, %s26
    %s46 = sphi 0, %s46
    %s48 = sphi 0, %s46
    %s49 = sphi 0, %s48
    %s63 = sphi 0, %s49
    %s67 = sphi 0, %s67
    %s69 = sphi 0, %s67
    %s70 = sphi 0, %s69
    %s84 = sphi 0, %s70
    %s88 = sphi 0, %s88
    %s90 = sphi 0, %s88
    %s91 = sphi 0, %s90
    %s105 = sphi 0, %s91
    %s109 = sphi 0, %s109
    %s111 = sphi 0, %s109
    %s112 = sphi 0, %s111
    %s126 = sphi 0, %s112
    %s130 = sphi 0, %s130
    %s132 = sphi 0, %s130
    %s133 = sphi 0, %s132
    %s147 = sphi 0, %s133
    %s153 = sphi 0, %s155
    %s156 = sphi 0, %s153
    %s157 = sphi 0, %s156
    %s173 = sphi 0, %s157
  $region4: #{layer_normalized_lrelu_tconv1d.1} parent=0 // loop_header_branch
    %15 = sbr.rel (%p13) target = $region8
  $region5: #{layer_normalized_lrelu_tconv1d.1} parent=0 // loop_body
    %s17 = ssub.s32 %s12, 1
    %s18 = ssub.s32 %s12, 2
    %s19 = sadd.s32 %s12, 1
    %s20 = ssub.s32 %s12, %s19
    %p21 = scmp.eq.s32.totalorder %s20, 0
    %s23 = sadd.s32 %s22, 1
    %s24 = scalar_select %p21, %s22, %s23
    %p27 = pneg %p21
    %p28 = scmp.eq.s32.totalorder %s12, 1
    %p29 = por %p27, %p28
    %p30 = scmp.ne.s32.totalorder %s22, %s25
    %p31 = scmp.eq.s32.totalorder %s12, 0
    %p32 = por %p30, %p31
    %p33 = scmp.ne.s32.totalorder %s22, %s25
    %p34 = scmp.eq.s32.totalorder %s17, 1
    %p35 = por %p33, %p34
    %p36 = scmp.ne.s32.totalorder %s25, %s26
    %p37 = scmp.eq.s32.totalorder %s17, 0
    %p38 = por %p36, %p37
    %p39 = scmp.ne.s32.totalorder %s25, %s26
    %p40 = scmp.eq.s32.totalorder %s18, 1
    %p41 = por %p39, %p40
    %p43 = scmp.ne.s32.totalorder %s26, %s42
    %p44 = scmp.eq.s32.totalorder %s18, 0
    %p45 = por %p43, %p44
    %s47 = sadd.s32 %s46, 1
    %p50 = scmp.eq.s32.totalorder %s12, 1
    %p51 = scmp.ne.s32.totalorder %s46, %s48
    %p52 = scmp.eq.s32.totalorder %s12, 0
    %p53 = por %p51, %p52
    %p54 = scmp.ne.s32.totalorder %s46, %s48
    %p55 = scmp.eq.s32.totalorder %s17, 1
    %p56 = por %p54, %p55
    %p57 = scmp.ne.s32.totalorder %s48, %s49
    %p58 = scmp.eq.s32.totalorder %s17, 0
    %p59 = por %p57, %p58
    %p60 = scmp.ne.s32.totalorder %s48, %s49
    %p61 = scmp.eq.s32.totalorder %s18, 1
    %p62 = por %p60, %p61
    %p64 = scmp.ne.s32.totalorder %s49, %s63
    %p65 = scmp.eq.s32.totalorder %s18, 0
    %p66 = por %p64, %p65
    %s68 = sadd.s32 %s67, 1
    %p71 = scmp.eq.s32.totalorder %s12, 1
    %p72 = scmp.ne.s32.totalorder %s67, %s69
    %p73 = scmp.eq.s32.totalorder %s12, 0
    %p74 = por %p72, %p73
    %p75 = scmp.ne.s32.totalorder %s67, %s69
    %p76 = scmp.eq.s32.totalorder %s17, 1
    %p77 = por %p75, %p76
    %p78 = scmp.ne.s32.totalorder %s69, %s70
    %p79 = scmp.eq.s32.totalorder %s17, 0
    %p80 = por %p78, %p79
    %p81 = scmp.ne.s32.totalorder %s69, %s70
    %p82 = scmp.eq.s32.totalorder %s18, 1
    %p83 = por %p81, %p82
    %p85 = scmp.ne.s32.totalorder %s70, %s84
    %p86 = scmp.eq.s32.totalorder %s18, 0
    %p87 = por %p85, %p86
    %s89 = sadd.s32 %s88, 1
    %p92 = scmp.eq.s32.totalorder %s12, 1
    %p93 = scmp.ne.s32.totalorder %s88, %s90
    %p94 = scmp.eq.s32.totalorder %s12, 0
    %p95 = por %p93, %p94
    %p96 = scmp.ne.s32.totalorder %s88, %s90
    %p97 = scmp.eq.s32.totalorder %s17, 1
    %p98 = por %p96, %p97
    %p99 = scmp.ne.s32.totalorder %s90, %s91
    %p100 = scmp.eq.s32.totalorder %s17, 0
    %p101 = por %p99, %p100
    %p102 = scmp.ne.s32.totalorder %s90, %s91
    %p103 = scmp.eq.s32.totalorder %s18, 1
    %p104 = por %p102, %p103
    %p106 = scmp.ne.s32.totalorder %s91, %s105
    %p107 = scmp.eq.s32.totalorder %s18, 0
    %p108 = por %p106, %p107
    %s110 = sadd.s32 %s109, 1
    %p113 = scmp.eq.s32.totalorder %s12, 1
    %p114 = scmp.ne.s32.totalorder %s109, %s111
    %p115 = scmp.eq.s32.totalorder %s12, 0
    %p116 = por %p114, %p115
    %p117 = scmp.ne.s32.totalorder %s109, %s111
    %p118 = scmp.eq.s32.totalorder %s17, 1
    %p119 = por %p117, %p118
    %p120 = scmp.ne.s32.totalorder %s111, %s112
    %p121 = scmp.eq.s32.totalorder %s17, 0
    %p122 = por %p120, %p121
    %p123 = scmp.ne.s32.totalorder %s111, %s112
    %p124 = scmp.eq.s32.totalorder %s18, 1
    %p125 = por %p123, %p124
    %p127 = scmp.ne.s32.totalorder %s112, %s126
    %p128 = scmp.eq.s32.totalorder %s18, 0
    %p129 = por %p127, %p128
    %s131 = sadd.s32 %s130, 1
    %p134 = scmp.eq.s32.totalorder %s12, 1
    %p135 = scmp.ne.s32.totalorder %s130, %s132
    %p136 = scmp.eq.s32.totalorder %s12, 0
    %p137 = por %p135, %p136
    %p138 = scmp.ne.s32.totalorder %s130, %s132
    %p139 = scmp.eq.s32.totalorder %s17, 1
    %p140 = por %p138, %p139
    %p141 = scmp.ne.s32.totalorder %s132, %s133
    %p142 = scmp.eq.s32.totalorder %s17, 0
    %p143 = por %p141, %p142
    %p144 = scmp.ne.s32.totalorder %s132, %s133
    %p145 = scmp.eq.s32.totalorder %s18, 1
    %p146 = por %p144, %p145
    %p148 = scmp.ne.s32.totalorder %s133, %s147
    %p149 = scmp.eq.s32.totalorder %s18, 0
    %p150 = por %p148, %p149
    %s151 = ssub.s32 %s12, %s19
    %p152 = scmp.eq.s32.totalorder %s151, 0
    %s154 = sadd.s32 %s153, 1
    %s155 = scalar_select %p152, %s153, %s154
    %p158 = pneg %p152
    %p159 = scmp.eq.s32.totalorder %s12, 1
    %p160 = por %p158, %p159
    %p161 = scmp.ne.s32.totalorder %s153, %s156
    %p162 = scmp.eq.s32.totalorder %s12, 0
    %p163 = por %p161, %p162
    %p164 = scmp.ne.s32.totalorder %s153, %s156
    %p165 = scmp.eq.s32.totalorder %s17, 1
    %p166 = por %p164, %p165
    %p167 = scmp.ne.s32.totalorder %s156, %s157
    %p168 = scmp.eq.s32.totalorder %s17, 0
    %p169 = por %p167, %p168
    %p170 = scmp.ne.s32.totalorder %s156, %s157
    %p171 = scmp.eq.s32.totalorder %s18, 1
    %p172 = por %p170, %p171
    %p174 = scmp.ne.s32.totalorder %s157, %s173
    %p175 = scmp.eq.s32.totalorder %s18, 0
    %p176 = por %p174, %p175
    %p177 = scmp.le.s32.totalorder 1, %s12
    %p178 = scmp.lt.s32.totalorder %s12, 3
    %p179 = pnand %p177, %p178
    %p180 = pneg %p179
    // Predicated region
    $region9: #{layer_normalized_lrelu_tconv1d.1} parent=5 // pred_check
      _
    $region10: #{layer_normalized_lrelu_tconv1d.1} parent=5 // pred_check_branch
      %182 = sbr.rel (%p179) target = $region12
    $region11: #{layer_normalized_lrelu_tconv1d.1} parent=5 // pred_region
      %s183 = ssub.s32 %s12, 1
      // Predicated region
      $region13: #{layer_normalized_lrelu_tconv1d.1} parent=11 // pred_check
        %p184 = pneg %p59
      $region14: #{layer_normalized_lrelu_tconv1d.1} parent=11 // pred_check_branch
        %186 = sbr.rel (%p184) target = $region16
      $region15: #{layer_normalized_lrelu_tconv1d.1} parent=11 // pred_region
        _
      $region16: #{layer_normalized_lrelu_tconv1d.1} parent=11 // pred_fallthru
        _
      // Predicated region
      $region17: #{layer_normalized_lrelu_tconv1d.1} parent=11 // pred_check
        %p187 = pneg %p80
      $region18: #{layer_normalized_lrelu_tconv1d.1} parent=11 // pred_check_branch
        %189 = sbr.rel (%p187) target = $region20
      $region19: #{layer_normalized_lrelu_tconv1d.1} parent=11 // pred_region
        _
      $region20: #{layer_normalized_lrelu_tconv1d.1} parent=11 // pred_fallthru
        _
      // Predicated region
      $region21: #{layer_normalized_lrelu_tconv1d.1} parent=11 // pred_check
        %p190 = pneg %p101
      $region22: #{layer_normalized_lrelu_tconv1d.1} parent=11 // pred_check_branch
        %192 = sbr.rel (%p190) target = $region24
      $region23: #{layer_normalized_lrelu_tconv1d.1} parent=11 // pred_region
        _
      $region24: #{layer_normalized_lrelu_tconv1d.1} parent=11 // pred_fallthru
        _
      // Predicated region
      $region25: #{layer_normalized_lrelu_tconv1d.1} parent=11 // pred_check
        %p193 = pneg %p122
      $region26: #{layer_normalized_lrelu_tconv1d.1} parent=11 // pred_check_branch
        %195 = sbr.rel (%p193) target = $region28
      $region27: #{layer_normalized_lrelu_tconv1d.1} parent=11 // pred_region
        _
      $region28: #{layer_normalized_lrelu_tconv1d.1} parent=11 // pred_fallthru
        _
      // Predicated region
      $region29: #{layer_normalized_lrelu_tconv1d.1} parent=11 // pred_check
        %p196 = pneg %p143
      $region30: #{layer_normalized_lrelu_tconv1d.1} parent=11 // pred_check_branch
        %198 = sbr.rel (%p196) target = $region32
      $region31: #{layer_normalized_lrelu_tconv1d.1} parent=11 // pred_region
        _
      $region32: #{layer_normalized_lrelu_tconv1d.1} parent=11 // pred_fallthru
        _
    $region12: #{layer_normalized_lrelu_tconv1d.1} parent=5 // pred_fallthru
      _
    %p199 = scmp.lt.s32.totalorder %s12, 2
    // Predicated region
    $region33: #{layer_normalized_lrelu_tconv1d.1} parent=5 // pred_check
      %p200 = pneg %p199
    $region34: #{layer_normalized_lrelu_tconv1d.1} parent=5 // pred_check_branch
      %202 = sbr.rel (%p200) target = $region36
    $region35: #{layer_normalized_lrelu_tconv1d.1} parent=5 // pred_region
      // Predicated region
      $region37: #{layer_normalized_lrelu_tconv1d.1} parent=35 // pred_check
        %p203 = pneg %p32
      $region38: #{layer_normalized_lrelu_tconv1d.1} parent=35 // pred_check_branch
        %205 = sbr.rel (%p203) target = $region40
      $region39: #{layer_normalized_lrelu_tconv1d.1} parent=35 // pred_region
        %p206 = scmp.lt.s32.totalorder %s12, 1
        %s207 = scalar_select %p206, %s12, 1
        %s208 = smul.addr %s207, 4
        %s209 = scalar_lea.vmem %s0, %s208
      $region40: #{layer_normalized_lrelu_tconv1d.1} parent=35 // pred_fallthru
        _
    $region36: #{layer_normalized_lrelu_tconv1d.1} parent=5 // pred_fallthru
      _
    %p210 = scmp.le.s32.totalorder 1, %s12
    %p211 = scmp.lt.s32.totalorder %s12, 3
    %p212 = pnand %p210, %p211
    %p213 = pneg %p212
    // Predicated region
    $region41: #{layer_normalized_lrelu_tconv1d.1} parent=5 // pred_check
      _
    $region42: #{layer_normalized_lrelu_tconv1d.1} parent=5 // pred_check_branch
      %215 = sbr.rel (%p212) target = $region44
    $region43: #{layer_normalized_lrelu_tconv1d.1} parent=5 // pred_region
      %s216 = ssub.s32 %s12, 1
      %p217 = scmp.lt.s32.totalorder %s17, 1
      %s218 = scalar_select %p217, %s17, 1
      %s219 = smul.addr %s218, 4
      %s220 = scalar_lea.vmem %s0, %s219
      %p221 = pneg %p38
      %p222 = pneg %p35
      %p223 = pneg %p59
      %p224 = pneg %p56
      %p225 = pneg %p80
      %p226 = pneg %p77
      %p227 = pneg %p101
      %p228 = pneg %p98
      %p229 = pneg %p122
      %p230 = pneg %p119
      %p231 = pneg %p143
      %p232 = pneg %p140
      %p233 = pneg %p169
      %p234 = pneg %p166
      %p235 = scmp.lt.s32.totalorder %s17, 1
      %s236 = scalar_select %p235, %s17, 1
      %s237 = smul.addr %s236, 8
      %s238 = scalar_lea.vmem %s6, %s237
      %p239 = scmp.lt.s32.totalorder %s17, 1
      %s240 = scalar_select %p239, %s17, 1
      %s241 = smul.addr %s240, 4
      %s242 = scalar_lea.vmem %s0, %s241
      %p243 = scmp.lt.s32.totalorder %s17, 1
      %s244 = scalar_select %p243, %s17, 1
      %s245 = smul.addr %s244, 8
      %s246 = scalar_lea.vmem %s6, %s245
      %247 = vst [vmem:[#allocation2 + $0xc] sm:$0x1] 1.0
      %v248 = vld [vmem:[%s1] sm:$0xff]
      %v249 = vld [vmem:[%s1 + $0x8] sm:$0xff]
      %v250 = vld [vmem:[%s1 + $0x10] sm:$0xff]
      %v251 = vld [vmem:[%s1 + $0x18] sm:$0xff]
      %v252 = vld [vmem:[%s242] sm:$0xf]
      %vm253 = vcmask 130048
      %v255 = vsel %vm253, %v252, 0
      %257 = vmatprep.subr.mxu0 %v249
      %258 = vmatpush1.msra.mxu0 %v248
      %259 = vmatprep.subr.mxu0 %v251
      %260 = vmatpush1.msra.mxu0 %v250
      %261 = vmatprep.subr.mxu0 0.0
      %262 = vmatpush1.msra.mxu0 0.0
      %263 = vmatprep.subr.mxu0 0.0
      %264 = vmatpush1.msra.mxu0 0.0
      %265 = vmatprep.subr.mxu0 0.0
      %266 = vmatpush1.msra.mxu0 0.0
      %267 = vmatprep.subr.mxu0 0.0
      %268 = vmatpush1.msra.mxu0 0.0
      %269 = vmatprep.subr.mxu0 0.0
      %270 = vmatpush1.msra.mxu0 0.0
      %271 = vmatprep.subr.mxu0 0.0
      %272 = vmatpush1.msra.mxu0 0.0
      %273 = vmatprep.subr.mxu0 0.0
      %274 = vmatpush1.msra.mxu0 0.0
      %275 = vmatprep.subr.mxu0 0.0
      %276 = vmatpush1.msra.mxu0 0.0
      %277 = vmatprep.subr.mxu0 0.0
      %278 = vmatpush1.msra.mxu0 0.0
      %279 = vmatprep.subr.mxu0 0.0
      %280 = vmatpush1.msra.mxu0 0.0
      %281 = vmatprep.subr.mxu0 0.0
      %282 = vmatpush1.msra.mxu0 0.0
      %283 = vmatprep.subr.mxu0 0.0
      %284 = vmatpush1.msra.mxu0 0.0
      %285 = vmatprep.subr.mxu0 0.0
      %286 = vmatpush1.msra.mxu0 0.0
      %287 = vmatprep.subr.mxu0 0.0
      %288 = vmatpush1.msra.mxu0 0.0
      %289 = vmatprep.subr.mxu0 0.0
      %290 = vmatpush1.msra.mxu0 0.0
      %291 = vmatprep.subr.mxu0 0.0
      %292 = vmatpush1.msra.mxu0 0.0
      %293 = vmatprep.subr.mxu0 0.0
      %294 = vmatpush1.msra.mxu0 0.0
      %295 = vmatprep.subr.mxu0 0.0
      %296 = vmatpush1.msra.mxu0 0.0
      %297 = vmatprep.subr.mxu0 0.0
      %298 = vmatpush1.msra.mxu0 0.0
      %299 = vmatprep.subr.mxu0 0.0
      %300 = vmatpush1.msra.mxu0 0.0
      %301 = vmatprep.subr.mxu0 0.0
      %302 = vmatpush1.msra.mxu0 0.0
      %303 = vmatprep.subr.mxu0 0.0
      %304 = vmatpush1.msra.mxu0 0.0
      %305 = vmatprep.subr.mxu0 0.0
      %306 = vmatpush1.msra.mxu0 0.0
      %307 = vmatprep.subr.mxu0 0.0
      %308 = vmatpush1.msra.mxu0 0.0
      %309 = vmatprep.subr.mxu0 0.0
      %310 = vmatpush1.msra.mxu0 0.0
      %311 = vmatprep.subr.mxu0 0.0
      %312 = vmatpush1.msra.mxu0 0.0
      %313 = vmatprep.subr.mxu0 0.0
      %314 = vmatpush1.msra.mxu0 0.0
      %315 = vmatprep.subr.mxu0 0.0
      %316 = vmatpush1.msra.mxu0 0.0
      %317 = vmatprep.subr.mxu0 0.0
      %318 = vmatpush1.msra.mxu0 0.0
      %319 = vmatprep.subr.mxu0 0.0
      %320 = vmatpush1.msra.mxu0 0.0
      %321 = vmatprep.mubr.f32.mxu0 0.0
      %322 = vmatmul.mubr.f32.gmra.mrb[0].mxu0 %v255
      %v323 = vpop.f32.mrb[0].mxu0
      %v324 = vadd.f32 0.0, %v323
      %v325 = vpop.f32.mrb[0].mxu0
      %v326 = vadd.f32 0.0, %v325
      %327 = vdwg.mxu0
      %328 = vst [vmem:[#allocation2] sm:$0xf] %v324
      %331 = vrot.lane.b32.xlu0 %v324, 127
      %v332 = vpop.permute.xlu0 %331
      %333 = vrot.lane.b32.xlu0 %v326, 127
      %v334 = vpop.permute.xlu0 %333
      %vm335 = vcmask 1039360
      %v336 = vsel %vm335, %v332, %v334
      %338 = vst [vmem:[#allocation2 + $0x4] sm:$0xf] %v336
      %339 = vrot.lane.b32.xlu0 %v324, 126
      %v340 = vpop.permute.xlu0 %339
      %341 = vrot.lane.b32.xlu0 %v326, 126
      %v342 = vpop.permute.xlu0 %341
      %vm343 = vcmask 1031168
      %v344 = vsel %vm343, %v340, %v342
      %346 = vst [vmem:[#allocation2 + $0x8] sm:$0xf] %v344
      %v347 = vld [vmem:[%s2] sm:$0xff]
      %v348 = vld [vmem:[#allocation2] sm:$0xff]
      %v349 = vld [vmem:[#allocation2 + $0x8] sm:$0x1f]
      %vm350 = vcmask 105472
      %v352 = vsel %vm350, %v347, 0
      %vm354 = vcmask 1044480
      %v356 = vsel %vm354, %v349, 0
      %358 = vmatprep.subr.mxu0 0.0
      %359 = vmatpush1.msra.mxu0 %v348
      %360 = vmatprep.subr.mxu0 0.0
      %361 = vmatpush1.msra.mxu0 %v356
      %362 = vmatprep.subr.mxu0 0.0
      %363 = vmatpush1.msra.mxu0 0.0
      %364 = vmatprep.subr.mxu0 0.0
      %365 = vmatpush1.msra.mxu0 0.0
      %366 = vmatprep.subr.mxu0 0.0
      %367 = vmatpush1.msra.mxu0 0.0
      %368 = vmatprep.subr.mxu0 0.0
      %369 = vmatpush1.msra.mxu0 0.0
      %370 = vmatprep.subr.mxu0 0.0
      %371 = vmatpush1.msra.mxu0 0.0
      %372 = vmatprep.subr.mxu0 0.0
      %373 = vmatpush1.msra.mxu0 0.0
      %374 = vmatprep.subr.mxu0 0.0
      %375 = vmatpush1.msra.mxu0 0.0
      %376 = vmatprep.subr.mxu0 0.0
      %377 = vmatpush1.msra.mxu0 0.0
      %378 = vmatprep.subr.mxu0 0.0
      %379 = vmatpush1.msra.mxu0 0.0
      %380 = vmatprep.subr.mxu0 0.0
      %381 = vmatpush1.msra.mxu0 0.0
      %382 = vmatprep.subr.mxu0 0.0
      %383 = vmatpush1.msra.mxu0 0.0
      %384 = vmatprep.subr.mxu0 0.0
      %385 = vmatpush1.msra.mxu0 0.0
      %386 = vmatprep.subr.mxu0 0.0
      %387 = vmatpush1.msra.mxu0 0.0
      %388 = vmatprep.subr.mxu0 0.0
      %389 = vmatpush1.msra.mxu0 0.0
      %390 = vmatprep.subr.mxu0 0.0
      %391 = vmatpush1.msra.mxu0 0.0
      %392 = vmatprep.subr.mxu0 0.0
      %393 = vmatpush1.msra.mxu0 0.0
      %394 = vmatprep.subr.mxu0 0.0
      %395 = vmatpush1.msra.mxu0 0.0
      %396 = vmatprep.subr.mxu0 0.0
      %397 = vmatpush1.msra.mxu0 0.0
      %398 = vmatprep.subr.mxu0 0.0
      %399 = vmatpush1.msra.mxu0 0.0
      %400 = vmatprep.subr.mxu0 0.0
      %401 = vmatpush1.msra.mxu0 0.0
      %402 = vmatprep.subr.mxu0 0.0
      %403 = vmatpush1.msra.mxu0 0.0
      %404 = vmatprep.subr.mxu0 0.0
      %405 = vmatpush1.msra.mxu0 0.0
      %406 = vmatprep.subr.mxu0 0.0
      %407 = vmatpush1.msra.mxu0 0.0
      %408 = vmatprep.subr.mxu0 0.0
      %409 = vmatpush1.msra.mxu0 0.0
      %410 = vmatprep.subr.mxu0 0.0
      %411 = vmatpush1.msra.mxu0 0.0
      %412 = vmatprep.subr.mxu0 0.0
      %413 = vmatpush1.msra.mxu0 0.0
      %414 = vmatprep.subr.mxu0 0.0
      %415 = vmatpush1.msra.mxu0 0.0
      %416 = vmatprep.subr.mxu0 0.0
      %417 = vmatpush1.msra.mxu0 0.0
      %418 = vmatprep.subr.mxu0 0.0
      %419 = vmatpush1.msra.mxu0 0.0
      %420 = vmatprep.subr.mxu0 0.0
      %421 = vmatpush1.msra.mxu0 0.0
      %422 = vmatprep.mubr.f32.mxu0 0.0
      %423 = vmatmul.mubr.f32.gmra.mrb[0].mxu0 %v352
      %v424 = vpop.f32.mrb[0].mxu0
      %v425 = vadd.f32 0.0, %v424
      %v426 = vpop.f32.mrb[0].mxu0
      %427 = vdwg.mxu0
      %v428 = vld [vmem:[%s4] sm:$0x1]
      %v430 = vlaneseq
      %v431 = vshrl.u32 %v430, 7
      %v432 = vsub.s32 0, %v431
      %v433 = vrot.slane %v428, %v432
      %v435 = vmul.f32 %v425, %v433
      %436 = vadd.xlane.f32.xlu0 %v435
      %v437 = vpop.xlane.xlu0 %436
      %v438 = vrot.slane %v437, 4
      %v439 = vadd.f32 %v437, %v438
      %v440 = vrot.slane %v439, 2
      %v441 = vadd.f32 %v439, %v440
      %v442 = vrot.slane %v441, 1
      %v443 = vadd.f32 %v441, %v442
      %v444 = vmul.f32 %v443, 0.00390625
      %v445 = vmul.f32 %v444, %v428
      %v447 = vlaneseq
      %v448 = vshrl.u32 %v447, 7
      %v449 = vsub.s32 0, %v448
      %v450 = vrot.slane %v445, %v449
      %v452 = vsub.f32 %v425, %v450
      %v453 = vmul.f32 %v452, %v452
      %v454 = vmul.f32 %v453, %v433
      %455 = vadd.xlane.f32.xlu0 %v454
      %v456 = vpop.xlane.xlu0 %455
      %v457 = vrot.slane %v456, 4
      %v458 = vadd.f32 %v456, %v457
      %v459 = vrot.slane %v458, 2
      %v460 = vadd.f32 %v458, %v459
      %v461 = vrot.slane %v460, 1
      %v462 = vadd.f32 %v460, %v461
      %v463 = vmul.f32 %v462, 0.00390625
      %v464 = vadd.f32 %v463, 1e-05
      %v465 = vrsqrt.pop %v464
      %v466 = vmul.f32 %v465, %v428
      %v468 = vlaneseq
      %v469 = vshrl.u32 %v468, 7
      %v470 = vsub.s32 0, %v469
      %v471 = vrot.slane %v466, %v470
      %v473 = vmul.f32 %v452, %v471
      %v474 = vld [vmem:[%s5] sm:$0xff]
      %v475 = vmul.f32 %v473, %v474
      %s476 = scalar_lea.vmem %s5, 8
      %v477 = vld [vmem:[%s476] sm:$0xff]
      %v478 = vadd.f32 %v475, %v477
      %vm479 = vcmp.ge.f32.partialorder %v478, 0.0
      %v480 = vmul.f32 %v478, 0.02
      %v481 = vsel %vm479, %v478, %v480
      %482 = vst [vmem:[%s246] sm:$0xff] %v481
      %p483 = scmp.lt.s32.totalorder %s17, 1
      %s484 = scalar_select %p483, %s17, 1
      %s485 = smul.addr %s484, 8
      %s486 = scalar_lea.vmem %s6, %s485
      // Predicated region
      $region45: #{layer_normalized_lrelu_tconv1d.1} parent=43 // pred_check
        %p487 = pneg %p166
      $region46: #{layer_normalized_lrelu_tconv1d.1} parent=43 // pred_check_branch
        %489 = sbr.rel (%p487) target = $region48
      $region47: #{layer_normalized_lrelu_tconv1d.1} parent=43 // pred_region
        _
      $region48: #{layer_normalized_lrelu_tconv1d.1} parent=43 // pred_fallthru
        _
    $region44: #{layer_normalized_lrelu_tconv1d.1} parent=5 // pred_fallthru
      _
    %p490 = scmp.le.s32.totalorder 2, %s12
    // Predicated region
    $region49: #{layer_normalized_lrelu_tconv1d.1} parent=5 // pred_check
      %p491 = pneg %p490
    $region50: #{layer_normalized_lrelu_tconv1d.1} parent=5 // pred_check_branch
      %493 = sbr.rel (%p491) target = $region52
    $region51: #{layer_normalized_lrelu_tconv1d.1} parent=5 // pred_region
      %s494 = ssub.s32 %s12, 2
      // Predicated region
      $region53: #{layer_normalized_lrelu_tconv1d.1} parent=51 // pred_check
        %p495 = pneg %p172
      $region54: #{layer_normalized_lrelu_tconv1d.1} parent=51 // pred_check_branch
        %497 = sbr.rel (%p495) target = $region56
      $region55: #{layer_normalized_lrelu_tconv1d.1} parent=51 // pred_region
        %p498 = scmp.lt.s32.totalorder %s18, 1
        %s499 = scalar_select %p498, %s18, 1
        %s500 = smul.addr %s499, 8
        %s501 = scalar_lea.vmem %s6, %s500
      $region56: #{layer_normalized_lrelu_tconv1d.1} parent=51 // pred_fallthru
        _
    $region52: #{layer_normalized_lrelu_tconv1d.1} parent=5 // pred_fallthru
      _
  $region6: #{layer_normalized_lrelu_tconv1d.1} parent=0 // loop_footer
    %s16 = sadd.s32 1, %s12
  $region7: #{layer_normalized_lrelu_tconv1d.1} parent=0 // loop_footer_branch
    %11 = sbr.rel target = $region3
  $region8: #{layer_normalized_lrelu_tconv1d.1} parent=0 // loop_exit
    _

</llo_original>
